<compile_context>
chip_gen: v7x
topology: tpu7x:2x2x1
jax: 0.10.0
libtpu: 0.0.40
codegen_flags: <defaults>
</compile_context>

<pallas_src>
import functools

import jax
import jax.numpy as jnp
from jax.experimental import pallas as pl
from jax.experimental.pallas import tpu as pltpu


def _round_up(x, m):
    return ((x + m - 1) // m) * m


def gtconv_kernel(w_ref, a_ref, o_ref, *, c_in, c_out):
    """w_ref: (C_out, C_in) f32 in SMEM; a_ref: (C_in, tr, 128); o_ref: (C_out, tr, 128)."""
    for o in range(c_out):
        # Unrolled VPU FMA over the tiny channel axis; w_ref[o, c] is an SMEM
        # scalar so each term is a scalar-splat multiply (no XLU broadcast).
        # The f32 upcast is fused into the loop (no-op for f32 inputs).
        acc = w_ref[o, 0] * a_ref[0].astype(jnp.float32)
        for c in range(1, c_in):
            acc = acc + w_ref[o, c] * a_ref[c].astype(jnp.float32)
        o_ref[o] = acc.astype(o_ref.dtype)


def gtconv(A, weight, softmax_flag=True, out_dtype=None):
    """Dense GTConv forward.

    A:      (C_in, N, M) stacked weighted adjacency matrices.
    weight: (C_out, C_in).
    Returns (C_out, N, M) in `out_dtype` (defaults to A.dtype).
    """
    c_out, c_in = weight.shape
    c_in_a, n, m = A.shape
    assert c_in == c_in_a, "weight in_channels must match number of graphs"
    out_dtype = A.dtype if out_dtype is None else out_dtype

    # Softmax over in_channels hoisted out of the kernel (tiny, runs once).
    filt = weight.astype(jnp.float32)
    if softmax_flag:
        filt = jax.nn.softmax(filt, axis=1)

    itemsize = jnp.dtype(A.dtype).itemsize
    # Sublane granule per dtype: sub-32-bit dtypes pack along sublanes.
    granule = {4: 8, 2: 16, 1: 32}.get(itemsize, 8)

    # Flatten spatial dims: pad only L = N*M up to a whole tile (lane-dense,
    # < 1 tile of slop) instead of padding N->8 and M->128 independently.
    L = n * m
    R = pl.cdiv(L, 128)  # 128-lane rows of real data

    # Generation-aware VMEM budgeting (v7x: 64 MiB/TC vs 128 MiB on v5e/v6e).
    try:
        vmem_cap = int(pltpu.get_tpu_info().vmem_capacity_bytes)
    except Exception:  # conservative fallback if the query is unavailable
        vmem_cap = 64 * 1024 * 1024
    budget = min(vmem_cap // 3, 24 * 1024 * 1024)
    # Per-row footprint: double-buffered in+out tiles plus the f32 working set
    # (upcast copies + accumulator), counted conservatively.
    per_row = 128 * (2 * (c_in + c_out) * itemsize + (c_in + c_out) * 4)
    tr_cap = max(granule, (budget // per_row) // granule * granule)
    tr_cap = min(tr_cap, 2048)  # HBM-bound: bigger tiles buy nothing
    tr = min(_round_up(R, granule), tr_cap)

    # Split into >= 2 grid steps when possible so v7x's two TensorCores share
    # the work (measured ~zero cost on single-TC v5e/v6e).
    if pl.cdiv(R, tr) == 1 and tr >= 2 * granule:
        tr = _round_up(pl.cdiv(R, 2), granule)

    grid_steps = pl.cdiv(R, tr)
    r_pad = grid_steps * tr
    l_pad = r_pad * 128

    A_flat = A.reshape(c_in, L)
    if l_pad != L:
        A_flat = jnp.pad(A_flat, ((0, 0), (0, l_pad - L)))
    A3 = A_flat.reshape(c_in, r_pad, 128)

    kernel = functools.partial(gtconv_kernel, c_in=c_in, c_out=c_out)

    cost = pl.CostEstimate(
        flops=2 * c_out * c_in * l_pad,
        bytes_accessed=(c_in * itemsize
                        + c_out * jnp.dtype(out_dtype).itemsize) * l_pad
        + c_out * c_in * 4,
        transcendentals=0,
    )

    out = pl.pallas_call(
        kernel,
        out_shape=jax.ShapeDtypeStruct((c_out, r_pad, 128), out_dtype),
        grid=(grid_steps,),
        in_specs=[
            # Filter lives in SMEM (whole tiny array); read as scalars inside.
            pl.BlockSpec(memory_space=pltpu.MemorySpace.SMEM),
            # All input channels for one flattened spatial tile.
            pl.BlockSpec((c_in, tr, 128), lambda i: (0, i, 0)),
        ],
        out_specs=pl.BlockSpec((c_out, tr, 128), lambda i: (0, i, 0)),
        compiler_params=pltpu.CompilerParams(
            dimension_semantics=("parallel",),
            vmem_limit_bytes=min(vmem_cap // 2, 64 * 1024 * 1024),
        ),
        cost_estimate=cost,
    )(filt, A3)

    out = out.reshape(c_out, l_pad)[:, :L].reshape(c_out, n, m)
    return out


def gtconv_ref(A, weight, softmax_flag=True):
    w = jax.nn.softmax(weight, axis=1) if softmax_flag else weight
    return jnp.einsum("oc,cnm->onm", w, A)


if __name__ == "__main__":
    # Small shapes consistent with the module:
    # in_channels = 4 graphs (edge types), out_channels = 2, N = 16 nodes.
    in_channels, out_channels, num_nodes = 4, 2, 16

    key = jax.random.PRNGKey(0)
    k_w, k_a = jax.random.split(key)

    # Deterministic parameter init matching nn.init.normal_(std=0.01).
    weight = 0.01 * jax.random.normal(
        k_w, (out_channels, in_channels), dtype=jnp.float32)

    # Dense stand-in for the list of DGL graphs' edge weights:
    # a stack of (sparse-ish) weighted adjacency matrices.
    A = jax.random.uniform(
        k_a, (in_channels, num_nodes, num_nodes), dtype=jnp.float32)
    A = A * (A > 0.5)  # zero out ~half the entries -> "edges"

    out = jax.block_until_ready(gtconv(A, weight, softmax_flag=True))
    ref = gtconv_ref(A, weight, softmax_flag=True)
    assert out.shape == (out_channels, num_nodes, num_nodes)
    assert jnp.allclose(out, ref, atol=1e-5, rtol=1e-5)

    # Non-aligned graph size exercises the flatten/pad/slice path, a multi-step
    # grid (2 TensorCore split), and the softmax_flag=False branch.
    n2 = 40
    A2 = jax.random.uniform(
        jax.random.PRNGKey(1), (in_channels, n2, n2), dtype=jnp.float32)
    out2 = jax.block_until_ready(gtconv(A2, weight, softmax_flag=False))
    ref2 = gtconv_ref(A2, weight, softmax_flag=False)
    assert out2.shape == (out_channels, n2, n2)
    assert jnp.allclose(out2, ref2, atol=1e-5, rtol=1e-5)

    print("KERNEL_OK")
</pallas_src>

<mosaic_0001>
module attributes {stable_mosaic.version = 11 : i64} {
  func.func @gtconv_kernel(%arg0: i32, %arg1: memref<2x4xf32, #tpu.memory_space<smem>>, %arg2: memref<4x8x128xf32, #tpu.memory_space<vmem>>, %arg3: memref<2x8x128xf32, #tpu.memory_space<vmem>>) attributes {dimension_semantics = [#tpu.dimension_semantics<parallel>], iteration_bounds = array<i64: 1>, scalar_prefetch = 0 : i64, scratch_operands = 0 : i64, tpu.core_type = #tpu.core_type<tc>, window_params = [{transform_indices = @transform_0, window_bounds = array<i64: 2, 4>}, {transform_indices = @transform_1, window_bounds = array<i64: 4, 8, 128>}, {transform_indices = @transform_2, window_bounds = array<i64: 2, 8, 128>}]} {
    %c0 = arith.constant 0 : index
    %c0_0 = arith.constant 0 : index
    %0 = memref.load %arg1[%c0, %c0_0] : memref<2x4xf32, #tpu.memory_space<smem>>
    %c0_1 = arith.constant 0 : index
    %c0_2 = arith.constant 0 : index
    %c0_3 = arith.constant 0 : index
    %1 = vector.load %arg2[%c0_1, %c0_2, %c0_3] : memref<4x8x128xf32, #tpu.memory_space<vmem>>, vector<1x8x128xf32>
    %2 = vector.shape_cast %1 : vector<1x8x128xf32> to vector<8x128xf32>
    %3 = vector.broadcast %0 : f32 to vector<8x128xf32>
    %4 = arith.mulf %3, %2 : vector<8x128xf32>
    %c0_4 = arith.constant 0 : index
    %c1 = arith.constant 1 : index
    %5 = memref.load %arg1[%c0_4, %c1] : memref<2x4xf32, #tpu.memory_space<smem>>
    %c1_5 = arith.constant 1 : index
    %c0_6 = arith.constant 0 : index
    %c0_7 = arith.constant 0 : index
    %6 = vector.load %arg2[%c1_5, %c0_6, %c0_7] : memref<4x8x128xf32, #tpu.memory_space<vmem>>, vector<1x8x128xf32>
    %7 = vector.shape_cast %6 : vector<1x8x128xf32> to vector<8x128xf32>
    %8 = vector.broadcast %5 : f32 to vector<8x128xf32>
    %9 = arith.mulf %8, %7 : vector<8x128xf32>
    %10 = arith.addf %4, %9 : vector<8x128xf32>
    %c0_8 = arith.constant 0 : index
    %c2 = arith.constant 2 : index
    %11 = memref.load %arg1[%c0_8, %c2] : memref<2x4xf32, #tpu.memory_space<smem>>
    %c2_9 = arith.constant 2 : index
    %c0_10 = arith.constant 0 : index
    %c0_11 = arith.constant 0 : index
    %12 = vector.load %arg2[%c2_9, %c0_10, %c0_11] : memref<4x8x128xf32, #tpu.memory_space<vmem>>, vector<1x8x128xf32>
    %13 = vector.shape_cast %12 : vector<1x8x128xf32> to vector<8x128xf32>
    %14 = vector.broadcast %11 : f32 to vector<8x128xf32>
    %15 = arith.mulf %14, %13 : vector<8x128xf32>
    %16 = arith.addf %10, %15 : vector<8x128xf32>
    %c0_12 = arith.constant 0 : index
    %c3 = arith.constant 3 : index
    %17 = memref.load %arg1[%c0_12, %c3] : memref<2x4xf32, #tpu.memory_space<smem>>
    %c3_13 = arith.constant 3 : index
    %c0_14 = arith.constant 0 : index
    %c0_15 = arith.constant 0 : index
    %18 = vector.load %arg2[%c3_13, %c0_14, %c0_15] : memref<4x8x128xf32, #tpu.memory_space<vmem>>, vector<1x8x128xf32>
    %19 = vector.shape_cast %18 : vector<1x8x128xf32> to vector<8x128xf32>
    %20 = vector.broadcast %17 : f32 to vector<8x128xf32>
    %21 = arith.mulf %20, %19 : vector<8x128xf32>
    %22 = arith.addf %16, %21 : vector<8x128xf32>
    %c0_16 = arith.constant 0 : index
    %c0_17 = arith.constant 0 : index
    %c0_18 = arith.constant 0 : index
    %23 = vector.load %arg3[%c0_16, %c0_17, %c0_18] : memref<2x8x128xf32, #tpu.memory_space<vmem>>, vector<1x8x128xf32>
    %24 = vector.shape_cast %23 : vector<1x8x128xf32> to vector<8x128xf32>
    %25 = vector.shape_cast %22 : vector<8x128xf32> to vector<1x8x128xf32>
    tpu.vector_store %arg3[%c0_16, %c0_17, %c0_18], %25 {strides = array<i32>} : memref<2x8x128xf32, #tpu.memory_space<vmem>>, vector<1x8x128xf32>,
    %c1_19 = arith.constant 1 : index
    %c0_20 = arith.constant 0 : index
    %26 = memref.load %arg1[%c1_19, %c0_20] : memref<2x4xf32, #tpu.memory_space<smem>>
    %c0_21 = arith.constant 0 : index
    %c0_22 = arith.constant 0 : index
    %c0_23 = arith.constant 0 : index
    %27 = vector.load %arg2[%c0_21, %c0_22, %c0_23] : memref<4x8x128xf32, #tpu.memory_space<vmem>>, vector<1x8x128xf32>
    %28 = vector.shape_cast %27 : vector<1x8x128xf32> to vector<8x128xf32>
    %29 = vector.broadcast %26 : f32 to vector<8x128xf32>
    %30 = arith.mulf %29, %28 : vector<8x128xf32>
    %c1_24 = arith.constant 1 : index
    %c1_25 = arith.constant 1 : index
    %31 = memref.load %arg1[%c1_24, %c1_25] : memref<2x4xf32, #tpu.memory_space<smem>>
    %c1_26 = arith.constant 1 : index
    %c0_27 = arith.constant 0 : index
    %c0_28 = arith.constant 0 : index
    %32 = vector.load %arg2[%c1_26, %c0_27, %c0_28] : memref<4x8x128xf32, #tpu.memory_space<vmem>>, vector<1x8x128xf32>
    %33 = vector.shape_cast %32 : vector<1x8x128xf32> to vector<8x128xf32>
    %34 = vector.broadcast %31 : f32 to vector<8x128xf32>
    %35 = arith.mulf %34, %33 : vector<8x128xf32>
    %36 = arith.addf %30, %35 : vector<8x128xf32>
    %c1_29 = arith.constant 1 : index
    %c2_30 = arith.constant 2 : index
    %37 = memref.load %arg1[%c1_29, %c2_30] : memref<2x4xf32, #tpu.memory_space<smem>>
    %c2_31 = arith.constant 2 : index
    %c0_32 = arith.constant 0 : index
    %c0_33 = arith.constant 0 : index
    %38 = vector.load %arg2[%c2_31, %c0_32, %c0_33] : memref<4x8x128xf32, #tpu.memory_space<vmem>>, vector<1x8x128xf32>
    %39 = vector.shape_cast %38 : vector<1x8x128xf32> to vector<8x128xf32>
    %40 = vector.broadcast %37 : f32 to vector<8x128xf32>
    %41 = arith.mulf %40, %39 : vector<8x128xf32>
    %42 = arith.addf %36, %41 : vector<8x128xf32>
    %c1_34 = arith.constant 1 : index
    %c3_35 = arith.constant 3 : index
    %43 = memref.load %arg1[%c1_34, %c3_35] : memref<2x4xf32, #tpu.memory_space<smem>>
    %c3_36 = arith.constant 3 : index
    %c0_37 = arith.constant 0 : index
    %c0_38 = arith.constant 0 : index
    %44 = vector.load %arg2[%c3_36, %c0_37, %c0_38] : memref<4x8x128xf32, #tpu.memory_space<vmem>>, vector<1x8x128xf32>
    %45 = vector.shape_cast %44 : vector<1x8x128xf32> to vector<8x128xf32>
    %46 = vector.broadcast %43 : f32 to vector<8x128xf32>
    %47 = arith.mulf %46, %45 : vector<8x128xf32>
    %48 = arith.addf %42, %47 : vector<8x128xf32>
    %c1_39 = arith.constant 1 : index
    %c0_40 = arith.constant 0 : index
    %c0_41 = arith.constant 0 : index
    %49 = vector.load %arg3[%c1_39, %c0_40, %c0_41] : memref<2x8x128xf32, #tpu.memory_space<vmem>>, vector<1x8x128xf32>
    %50 = vector.shape_cast %49 : vector<1x8x128xf32> to vector<8x128xf32>
    %51 = vector.shape_cast %48 : vector<8x128xf32> to vector<1x8x128xf32>
    tpu.vector_store %arg3[%c1_39, %c0_40, %c0_41], %51 {strides = array<i32>} : memref<2x8x128xf32, #tpu.memory_space<vmem>>, vector<1x8x128xf32>,
    return
  }
  func.func @transform_0(%arg0: i32) -> (i32, i32) {
    %c0_i32 = arith.constant 0 : i32
    %c0_i32_0 = arith.constant 0 : i32
    %c0_i32_1 = arith.constant 0 : i32
    return %c0_i32, %c0_i32_0 : i32, i32
  }
  func.func @transform_1(%arg0: i32) -> (i32, i32, i32) {
    %c0_i32 = arith.constant 0 : i32
    %c0_i32_0 = arith.constant 0 : i32
    %c0_i32_1 = arith.constant 0 : i32
    return %c0_i32, %arg0, %c0_i32_0 : i32, i32, i32
  }
  func.func @transform_2(%arg0: i32) -> (i32, i32, i32) {
    %c0_i32 = arith.constant 0 : i32
    %c0_i32_0 = arith.constant 0 : i32
    %c0_i32_1 = arith.constant 0 : i32
    return %c0_i32, %arg0, %c0_i32_0 : i32, i32, i32
  }
}

</mosaic_0001>

<llo_original>
// kernel: tpu_custom_call.1
$region0: #{tpu_custom_call.1}
  #allocation0 [shape = 'u32[]', space=smem, size = 0x4, offset = 0x4, fixed_abs, tag = 'smem constant byte address 0x4 - core index']
  #allocation1 [shape = 'u32[144,128]{1,0:T(1,128)}', space=vmem, size = 0x12000, scoped, tag = 'internal scratch']
  %s0 = inlined_call_operand.hbm [shape: f32[2,4], index: 0, kind: input, shape index: {}]
  %s1 = inlined_call_operand.hbm [shape: f32[4,8,128], index: 1, kind: input, shape index: {}]
  %s2 = inlined_call_operand.hbm [shape: f32[2,8,128], index: 2, kind: output, shape index: {}]
  %s3 = sld [smem:[#allocation0]]
  $region26: #{tpu_custom_call.1} parent=0
    _
  %s5 = ssub.s32 1, %s3
  %s6 = scalar_select 0, %s5, %s3
  $region1: #{tpu_custom_call.1} parent=0
    #allocation2 [shape = 'u8[1024]{0}', space=smem, size = 0x400, scoped, tag = 'input window, operand 0, single buffered']
    #allocation3 [shape = 's32[1]{0}', space=sflag, size = 0x4, scoped, tag = 'scoped memory for tpu_custom_call.1']
    #allocation4 [shape = 's32[1]{0}', space=sflag, size = 0x4, scoped, tag = 'scoped memory for tpu_custom_call.1']
    #allocation5 [shape = 's32[1]{0}', space=sflag, size = 0x4, scoped, tag = 'scoped memory for tpu_custom_call.1']
    #allocation6 [shape = 'u8[16384]{0}', space=vmem, size = 0x4000, scoped, tag = 'input window, operand 1, single buffered']
    #allocation7 [shape = 'u8[8192]{0}', space=vmem, size = 0x2000, scoped, tag = 'output window, operand 0, single buffered']
    %7 = vsyncpa [#allocation5], 0
    %8 = vsyncpa [#allocation3], 0
    %9 = vsyncpa [#allocation4], 0
    // Predicated region
    $region2: #{tpu_custom_call.1} parent=1 // pred_check
      _
    $region3: #{tpu_custom_call.1} parent=1 // pred_check_branch
      %11 = sbr.rel (0) target = $region5
    $region4: #{tpu_custom_call.1} parent=1 // pred_region
      %s13 = ssub.s32 32, 32
      %14 = vsyncadd [#allocation5], %s13
      %17 = dma.hbm_to_smem %s0, 32, [#allocation2], [#allocation5]
    $region5: #{tpu_custom_call.1} parent=1 // pred_fallthru
      _
    // Predicated region
    $region6: #{tpu_custom_call.1} parent=1 // pred_check
      _
    $region7: #{tpu_custom_call.1} parent=1 // pred_check_branch
      %19 = sbr.rel (0) target = $region9
    $region8: #{tpu_custom_call.1} parent=1 // pred_region
      %s21 = ssub.s32 512, 512
      %22 = vsyncadd [#allocation3], %s21
      %s23 = sshll.u32 [#allocation6], 4
      %s24 = int_to_ptr.vmem [resolvable:$true] %s23
      %29 = dma.hbm_to_vmem [thread:$0]  %s1, 512, %s24, [#allocation3], 128, 128, 8
    $region9: #{tpu_custom_call.1} parent=1 // pred_fallthru
      _
    // Predicated region
    $region10: #{tpu_custom_call.1} parent=1 // pred_check
      _
    $region11: #{tpu_custom_call.1} parent=1 // pred_check_branch
      %31 = sbr.rel (0) target = $region13
    $region12: #{tpu_custom_call.1} parent=1 // pred_region
      %32 = dma.done [#allocation5], 32
    $region13: #{tpu_custom_call.1} parent=1 // pred_fallthru
      _
    // Predicated region
    $region14: #{tpu_custom_call.1} parent=1 // pred_check
      _
    $region15: #{tpu_custom_call.1} parent=1 // pred_check_branch
      %34 = sbr.rel (0) target = $region17
    $region16: #{tpu_custom_call.1} parent=1 // pred_region
      %35 = dma.done [#allocation3], 512
    $region17: #{tpu_custom_call.1} parent=1 // pred_fallthru
      _
    %36 = sfence
    %s37 = sld [smem:[#allocation2]]
    %v38 = vld [vmem:[#allocation6] sm:$0xff]
    %v39 = vstv %s37
    %v40 = vmul.f32 %v39, %v38
    %s41 = sld [smem:[#allocation2 + $0x1]]
    %s42 = scalar_lea.vmem [#allocation6], 8
    %v43 = vld [vmem:[%s42] sm:$0xff]
    %v44 = vstv %s41
    %v45 = vmul.f32 %v44, %v43
    %v46 = vadd.f32 %v40, %v45
    %s47 = sld [smem:[#allocation2 + $0x2]]
    %s48 = scalar_lea.vmem [#allocation6], 16
    %v49 = vld [vmem:[%s48] sm:$0xff]
    %v50 = vstv %s47
    %v51 = vmul.f32 %v50, %v49
    %v52 = vadd.f32 %v46, %v51
    %s53 = sld [smem:[#allocation2 + $0x3]]
    %s54 = scalar_lea.vmem [#allocation6], 24
    %v55 = vld [vmem:[%s54] sm:$0xff]
    %v56 = vstv %s53
    %v57 = vmul.f32 %v56, %v55
    %v58 = vadd.f32 %v52, %v57
    %59 = vst [vmem:[#allocation7] sm:$0xff] %v58
    %s60 = sld [smem:[#allocation2 + $0x80]]
    %v61 = vld [vmem:[#allocation6] sm:$0xff]
    %v62 = vstv %s60
    %v63 = vmul.f32 %v62, %v61
    %s64 = sld [smem:[#allocation2 + $0x81]]
    %v65 = vld [vmem:[%s42] sm:$0xff]
    %v66 = vstv %s64
    %v67 = vmul.f32 %v66, %v65
    %v68 = vadd.f32 %v63, %v67
    %s69 = sld [smem:[#allocation2 + $0x82]]
    %v70 = vld [vmem:[%s48] sm:$0xff]
    %v71 = vstv %s69
    %v72 = vmul.f32 %v71, %v70
    %v73 = vadd.f32 %v68, %v72
    %s74 = sld [smem:[#allocation2 + $0x83]]
    %v75 = vld [vmem:[%s54] sm:$0xff]
    %v76 = vstv %s74
    %v77 = vmul.f32 %v76, %v75
    %v78 = vadd.f32 %v73, %v77
    %s79 = scalar_lea.vmem [#allocation7], 8
    %80 = vst [vmem:[%s79] sm:$0xff] %v78
    // Predicated region
    $region18: #{tpu_custom_call.1} parent=1 // pred_check
      _
    $region19: #{tpu_custom_call.1} parent=1 // pred_check_branch
      %82 = sbr.rel (0) target = $region21
    $region20: #{tpu_custom_call.1} parent=1 // pred_region
      %s84 = ssub.s32 256, 256
      %85 = vsyncadd [#allocation4], %s84
      %s86 = sshll.u32 [#allocation7], 4
      %s87 = int_to_ptr.vmem [resolvable:$true] %s86
      %92 = dma.vmem_to_hbm [thread:$0]  %s87, 256, %s2, [#allocation4], 128, 128, 8
    $region21: #{tpu_custom_call.1} parent=1 // pred_fallthru
      _
    // Predicated region
    $region22: #{tpu_custom_call.1} parent=1 // pred_check
      _
    $region23: #{tpu_custom_call.1} parent=1 // pred_check_branch
      %94 = sbr.rel (0) target = $region25
    $region24: #{tpu_custom_call.1} parent=1 // pred_region
      %95 = dma.done [#allocation4], 256
    $region25: #{tpu_custom_call.1} parent=1 // pred_fallthru
      _
    %96 = vsyncpa [#allocation3], 1
    %97 = vsyncpa [#allocation4], 1
    %98 = vsyncpa [#allocation5], 1

</llo_original>
